<compile_context>
chip_gen: v7x
topology: tpu7x:2x2x1
jax: 0.10.0
libtpu: 0.0.40
codegen_flags: <defaults>
</compile_context>

<pallas_src>
import functools

import jax
import jax.numpy as jnp
from jax.experimental import pallas as pl
from jax.experimental.pallas import tpu as pltpu


def _round_up(x, m):
    return ((x + m - 1) // m) * m


def _mean_kernel(x_ref, o_ref, *, n_reads):
    # x_ref: (tile_s * n_reads, C) -- rows for tile_s consecutive sites; the
    #        n_reads rows of each site are contiguous (row-major layout).
    # o_ref: (tile_s, C)
    tile_s = o_ref.shape[0]
    # Reduce over reads with static sublane-strided loads: read r of every
    # site in the tile lives at rows {r, r + n_reads, r + 2*n_reads, ...}.
    acc = x_ref[pl.ds(0, tile_s, stride=n_reads), :].astype(jnp.float32)
    for r in range(1, n_reads):
        acc = acc + x_ref[pl.ds(r, tile_s, stride=n_reads), :].astype(jnp.float32)
    o_ref[...] = (acc * (1.0 / n_reads)).astype(o_ref.dtype)


def _choose_tile_s(n_sites, n_reads, channels, itemsize):
    """Sites per block, using the real (lane-padded) VMEM/DMA footprint."""
    # Lane dim pads to 128 in VMEM and in the kernel's DMAs; that is the real
    # per-site cost, not channels * itemsize.
    padded_c = _round_up(max(channels, 1), 128)
    per_site_bytes = n_reads * padded_c * itemsize
    # ~4 MiB per input buffer (mem-bound sweet spot is ~2-8 MiB).  Safe on
    # v5e/v6e/v7x scoped-VMEM defaults even when double-buffered.
    target_block_bytes = 4 * 1024 * 1024
    tile = max(8, (target_block_bytes // max(per_site_bytes, 1)) // 8 * 8)
    # Keep the grid multi-step when the problem allows it so v7x can shard
    # sites across both TensorCores and steps overlap DMA with compute.
    if n_sites >= 32:
        tile = min(tile, max(8, (n_sites // 4) // 8 * 8))
    elif n_sites >= 16:
        tile = min(tile, 8)
    if tile >= n_sites:
        # Single full-extent block (exempt from the multiple-of-8 rule).
        return n_sites
    return tile


def mean_aggregate(x, input_channel, n_reads_per_site, tile_s=None):
    """Pallas implementation of MeanAggregator.aggregate.

    x: (n_sites * n_reads_per_site, input_channel) -> (n_sites, input_channel).
    The 2D array is consumed as-is (no host reshape / HBM relayout).
    """
    total_rows, channels = x.shape
    assert channels == input_channel
    assert total_rows % n_reads_per_site == 0
    n_sites = total_rows // n_reads_per_site

    if tile_s is None:
        tile_s = _choose_tile_s(
            n_sites, n_reads_per_site, input_channel, x.dtype.itemsize
        )
    tile_s = min(tile_s, n_sites)

    grid = (pl.cdiv(n_sites, tile_s),)

    padded_c = _round_up(input_channel, 128)
    itemsize = x.dtype.itemsize
    cost = pl.CostEstimate(
        flops=n_sites * n_reads_per_site * input_channel + n_sites * input_channel,
        transcendentals=0,
        bytes_accessed=(
            n_sites * n_reads_per_site * padded_c * itemsize  # padded input
            + n_sites * padded_c * itemsize                    # padded output
        ),
    )

    kernel = functools.partial(_mean_kernel, n_reads=n_reads_per_site)

    return pl.pallas_call(
        kernel,
        out_shape=jax.ShapeDtypeStruct((n_sites, input_channel), x.dtype),
        grid=grid,
        in_specs=[
            pl.BlockSpec(
                (tile_s * n_reads_per_site, input_channel),
                lambda i: (i, 0),
            )
        ],
        out_specs=pl.BlockSpec((tile_s, input_channel), lambda i: (i, 0)),
        compiler_params=pltpu.CompilerParams(
            dimension_semantics=("parallel",)
        ),
        cost_estimate=cost,
    )(x)


def mean_aggregator_forward(x, input_channel, n_reads_per_site=20):
    """Mirrors MeanAggregator.forward: accepts an array or a dict {'X','kmer'}."""
    is_dict = isinstance(x, dict)
    if is_dict:
        x_arr, kmer = x["X"], x["kmer"]
    else:
        x_arr = x
    out = mean_aggregate(x_arr, input_channel, n_reads_per_site)
    if is_dict:
        return {"X": out, "kmer": kmer}
    return out


if __name__ == "__main__":
    input_channel = 32
    n_reads_per_site = 20
    n_sites = 4

    key = jax.random.PRNGKey(0)
    k0, k1, k2 = jax.random.split(key, 3)
    x = jax.random.normal(
        k0, (n_sites * n_reads_per_site, input_channel), dtype=jnp.float32
    )

    out = mean_aggregator_forward(x, input_channel, n_reads_per_site)
    out = jax.block_until_ready(out)

    # reference check (plain JAX)
    ref = jnp.mean(x.reshape(-1, n_reads_per_site, input_channel), axis=1)
    assert out.shape == (n_sites, input_channel)
    assert jnp.allclose(out, ref, atol=1e-5, rtol=1e-5)

    # dict-input path (kmer passthrough)
    kmer = jnp.arange(n_sites, dtype=jnp.int32)
    out_d = mean_aggregator_forward(
        {"X": x, "kmer": kmer}, input_channel, n_reads_per_site
    )
    jax.block_until_ready(out_d["X"])
    assert jnp.allclose(out_d["X"], ref, atol=1e-5, rtol=1e-5)
    assert jnp.array_equal(out_d["kmer"], kmer)

    # multi-block path with a ragged last tile (explicit tile_s)
    n_sites2 = 20
    x2 = jax.random.normal(
        k1, (n_sites2 * n_reads_per_site, input_channel), dtype=jnp.float32
    )
    out2 = mean_aggregate(x2, input_channel, n_reads_per_site, tile_s=8)
    out2 = jax.block_until_ready(out2)
    ref2 = jnp.mean(x2.reshape(-1, n_reads_per_site, input_channel), axis=1)
    assert out2.shape == (n_sites2, input_channel)
    assert jnp.allclose(out2, ref2, atol=1e-5, rtol=1e-5)

    # auto-tiled multi-step grid path (exercises _choose_tile_s splitting)
    n_sites3 = 48
    x3 = jax.random.normal(
        k2, (n_sites3 * n_reads_per_site, input_channel), dtype=jnp.float32
    )
    out3 = mean_aggregate(x3, input_channel, n_reads_per_site)
    out3 = jax.block_until_ready(out3)
    ref3 = jnp.mean(x3.reshape(-1, n_reads_per_site, input_channel), axis=1)
    assert out3.shape == (n_sites3, input_channel)
    assert jnp.allclose(out3, ref3, atol=1e-5, rtol=1e-5)

    print("KERNEL_OK")
</pallas_src>

<mosaic_0001>
module attributes {stable_mosaic.version = 11 : i64} {
  func.func @_mean_kernel(%arg0: i32, %arg1: memref<80x32xf32, #tpu.memory_space<vmem>>, %arg2: memref<4x32xf32, #tpu.memory_space<vmem>>) attributes {dimension_semantics = [#tpu.dimension_semantics<parallel>], iteration_bounds = array<i64: 1>, scalar_prefetch = 0 : i64, scratch_operands = 0 : i64, tpu.core_type = #tpu.core_type<tc>, window_params = [{transform_indices = @transform_0, window_bounds = array<i64: 80, 32>}, {transform_indices = @transform_1, window_bounds = array<i64: 4, 32>}]} {
    %c0 = arith.constant 0 : index
    %c0_0 = arith.constant 0 : index
    %0 = tpu.strided_load %arg1[%c0, %c0_0] {strides = array<i32: 20, 1>} : memref<80x32xf32, #tpu.memory_space<vmem>>, vector<4x32xf32>
    %c1 = arith.constant 1 : index
    %c0_1 = arith.constant 0 : index
    %1 = tpu.strided_load %arg1[%c1, %c0_1] {strides = array<i32: 20, 1>} : memref<80x32xf32, #tpu.memory_space<vmem>>, vector<4x32xf32>
    %2 = arith.addf %0, %1 : vector<4x32xf32>
    %c2 = arith.constant 2 : index
    %c0_2 = arith.constant 0 : index
    %3 = tpu.strided_load %arg1[%c2, %c0_2] {strides = array<i32: 20, 1>} : memref<80x32xf32, #tpu.memory_space<vmem>>, vector<4x32xf32>
    %4 = arith.addf %2, %3 : vector<4x32xf32>
    %c3 = arith.constant 3 : index
    %c0_3 = arith.constant 0 : index
    %5 = tpu.strided_load %arg1[%c3, %c0_3] {strides = array<i32: 20, 1>} : memref<80x32xf32, #tpu.memory_space<vmem>>, vector<4x32xf32>
    %6 = arith.addf %4, %5 : vector<4x32xf32>
    %c4 = arith.constant 4 : index
    %c0_4 = arith.constant 0 : index
    %7 = tpu.strided_load %arg1[%c4, %c0_4] {strides = array<i32: 20, 1>} : memref<80x32xf32, #tpu.memory_space<vmem>>, vector<4x32xf32>
    %8 = arith.addf %6, %7 : vector<4x32xf32>
    %c5 = arith.constant 5 : index
    %c0_5 = arith.constant 0 : index
    %9 = tpu.strided_load %arg1[%c5, %c0_5] {strides = array<i32: 20, 1>} : memref<80x32xf32, #tpu.memory_space<vmem>>, vector<4x32xf32>
    %10 = arith.addf %8, %9 : vector<4x32xf32>
    %c6 = arith.constant 6 : index
    %c0_6 = arith.constant 0 : index
    %11 = tpu.strided_load %arg1[%c6, %c0_6] {strides = array<i32: 20, 1>} : memref<80x32xf32, #tpu.memory_space<vmem>>, vector<4x32xf32>
    %12 = arith.addf %10, %11 : vector<4x32xf32>
    %c7 = arith.constant 7 : index
    %c0_7 = arith.constant 0 : index
    %13 = tpu.strided_load %arg1[%c7, %c0_7] {strides = array<i32: 20, 1>} : memref<80x32xf32, #tpu.memory_space<vmem>>, vector<4x32xf32>
    %14 = arith.addf %12, %13 : vector<4x32xf32>
    %c8 = arith.constant 8 : index
    %c0_8 = arith.constant 0 : index
    %15 = tpu.strided_load %arg1[%c8, %c0_8] {strides = array<i32: 20, 1>} : memref<80x32xf32, #tpu.memory_space<vmem>>, vector<4x32xf32>
    %16 = arith.addf %14, %15 : vector<4x32xf32>
    %c9 = arith.constant 9 : index
    %c0_9 = arith.constant 0 : index
    %17 = tpu.strided_load %arg1[%c9, %c0_9] {strides = array<i32: 20, 1>} : memref<80x32xf32, #tpu.memory_space<vmem>>, vector<4x32xf32>
    %18 = arith.addf %16, %17 : vector<4x32xf32>
    %c10 = arith.constant 10 : index
    %c0_10 = arith.constant 0 : index
    %19 = tpu.strided_load %arg1[%c10, %c0_10] {strides = array<i32: 20, 1>} : memref<80x32xf32, #tpu.memory_space<vmem>>, vector<4x32xf32>
    %20 = arith.addf %18, %19 : vector<4x32xf32>
    %c11 = arith.constant 11 : index
    %c0_11 = arith.constant 0 : index
    %21 = tpu.strided_load %arg1[%c11, %c0_11] {strides = array<i32: 20, 1>} : memref<80x32xf32, #tpu.memory_space<vmem>>, vector<4x32xf32>
    %22 = arith.addf %20, %21 : vector<4x32xf32>
    %c12 = arith.constant 12 : index
    %c0_12 = arith.constant 0 : index
    %23 = tpu.strided_load %arg1[%c12, %c0_12] {strides = array<i32: 20, 1>} : memref<80x32xf32, #tpu.memory_space<vmem>>, vector<4x32xf32>
    %24 = arith.addf %22, %23 : vector<4x32xf32>
    %c13 = arith.constant 13 : index
    %c0_13 = arith.constant 0 : index
    %25 = tpu.strided_load %arg1[%c13, %c0_13] {strides = array<i32: 20, 1>} : memref<80x32xf32, #tpu.memory_space<vmem>>, vector<4x32xf32>
    %26 = arith.addf %24, %25 : vector<4x32xf32>
    %c14 = arith.constant 14 : index
    %c0_14 = arith.constant 0 : index
    %27 = tpu.strided_load %arg1[%c14, %c0_14] {strides = array<i32: 20, 1>} : memref<80x32xf32, #tpu.memory_space<vmem>>, vector<4x32xf32>
    %28 = arith.addf %26, %27 : vector<4x32xf32>
    %c15 = arith.constant 15 : index
    %c0_15 = arith.constant 0 : index
    %29 = tpu.strided_load %arg1[%c15, %c0_15] {strides = array<i32: 20, 1>} : memref<80x32xf32, #tpu.memory_space<vmem>>, vector<4x32xf32>
    %30 = arith.addf %28, %29 : vector<4x32xf32>
    %c16 = arith.constant 16 : index
    %c0_16 = arith.constant 0 : index
    %31 = tpu.strided_load %arg1[%c16, %c0_16] {strides = array<i32: 20, 1>} : memref<80x32xf32, #tpu.memory_space<vmem>>, vector<4x32xf32>
    %32 = arith.addf %30, %31 : vector<4x32xf32>
    %c17 = arith.constant 17 : index
    %c0_17 = arith.constant 0 : index
    %33 = tpu.strided_load %arg1[%c17, %c0_17] {strides = array<i32: 20, 1>} : memref<80x32xf32, #tpu.memory_space<vmem>>, vector<4x32xf32>
    %34 = arith.addf %32, %33 : vector<4x32xf32>
    %c18 = arith.constant 18 : index
    %c0_18 = arith.constant 0 : index
    %35 = tpu.strided_load %arg1[%c18, %c0_18] {strides = array<i32: 20, 1>} : memref<80x32xf32, #tpu.memory_space<vmem>>, vector<4x32xf32>
    %36 = arith.addf %34, %35 : vector<4x32xf32>
    %c19 = arith.constant 19 : index
    %c0_19 = arith.constant 0 : index
    %37 = tpu.strided_load %arg1[%c19, %c0_19] {strides = array<i32: 20, 1>} : memref<80x32xf32, #tpu.memory_space<vmem>>, vector<4x32xf32>
    %38 = arith.addf %36, %37 : vector<4x32xf32>
    %cst = arith.constant 5.000000e-02 : f32
    %39 = vector.broadcast %cst : f32 to vector<4x32xf32>
    %40 = arith.mulf %38, %39 : vector<4x32xf32>
    %c0_20 = arith.constant 0 : index
    %c0_21 = arith.constant 0 : index
    %41 = vector.load %arg2[%c0_20, %c0_21] : memref<4x32xf32, #tpu.memory_space<vmem>>, vector<4x32xf32>
    tpu.vector_store %arg2[%c0_20, %c0_21], %40 {strides = array<i32>} : memref<4x32xf32, #tpu.memory_space<vmem>>, vector<4x32xf32>,
    return
  }
  func.func @transform_0(%arg0: i32) -> (i32, i32) {
    %c0_i32 = arith.constant 0 : i32
    %c0_i32_0 = arith.constant 0 : i32
    return %arg0, %c0_i32 : i32, i32
  }
  func.func @transform_1(%arg0: i32) -> (i32, i32) {
    %c0_i32 = arith.constant 0 : i32
    %c0_i32_0 = arith.constant 0 : i32
    return %arg0, %c0_i32 : i32, i32
  }
}

</mosaic_0001>

<llo_original>
// kernel: tpu_custom_call.1
$region0: #{tpu_custom_call.1}
  #allocation0 [shape = 'u32[]', space=smem, size = 0x4, offset = 0x4, fixed_abs, tag = 'smem constant byte address 0x4 - core index']
  #allocation1 [shape = 'u32[144,128]{1,0:T(1,128)}', space=vmem, size = 0x12000, scoped, tag = 'internal scratch']
  %s0 = inlined_call_operand.vmem [shape: f32[80,32], index: 0, kind: input, shape index: {}]
  %s1 = inlined_call_operand.hbm [shape: f32[4,32], index: 1, kind: output, shape index: {}]
  %s2 = sld [smem:[#allocation0]]
  $region14: #{tpu_custom_call.1} parent=0
    _
  %s4 = ssub.s32 1, %s2
  %s5 = scalar_select 0, %s4, %s2
  $region1: #{tpu_custom_call.1} parent=0
    #allocation2 [shape = 'u8[2048]{0}', space=vmem, size = 0x800, scoped, tag = 'output window, operand 0, single buffered']
    #allocation3 [shape = 's32[1]{0}', space=sflag, size = 0x4, scoped, tag = 'scoped memory for tpu_custom_call.1']
    %6 = vsyncpa [#allocation3], 0
    // Predicated region
    $region2: #{tpu_custom_call.1} parent=1 // pred_check
      _
    $region3: #{tpu_custom_call.1} parent=1 // pred_check_branch
      %8 = sbr.rel (0) target = $region5
    $region4: #{tpu_custom_call.1} parent=1 // pred_region
      _
    $region5: #{tpu_custom_call.1} parent=1 // pred_fallthru
      _
    %v9 = vld [vmem:[%s0] ss:$20 sm:$0xf]
    %s10 = scalar_lea.vmem %s0, 1
    %v11 = vld [vmem:[%s10] ss:$20 sm:$0xf]
    %v12 = vadd.f32 %v9, %v11
    %s13 = scalar_lea.vmem %s0, 2
    %v14 = vld [vmem:[%s13] ss:$20 sm:$0xf]
    %v15 = vadd.f32 %v12, %v14
    %s16 = scalar_lea.vmem %s0, 3
    %v17 = vld [vmem:[%s16] ss:$20 sm:$0xf]
    %v18 = vadd.f32 %v15, %v17
    %s19 = scalar_lea.vmem %s0, 4
    %v20 = vld [vmem:[%s19] ss:$20 sm:$0xf]
    %v21 = vadd.f32 %v18, %v20
    %s22 = scalar_lea.vmem %s0, 5
    %v23 = vld [vmem:[%s22] ss:$20 sm:$0xf]
    %v24 = vadd.f32 %v21, %v23
    %s25 = scalar_lea.vmem %s0, 6
    %v26 = vld [vmem:[%s25] ss:$20 sm:$0xf]
    %v27 = vadd.f32 %v24, %v26
    %s28 = scalar_lea.vmem %s0, 7
    %v29 = vld [vmem:[%s28] ss:$20 sm:$0xf]
    %v30 = vadd.f32 %v27, %v29
    %s31 = scalar_lea.vmem %s0, 8
    %v32 = vld [vmem:[%s31] ss:$20 sm:$0xf]
    %v33 = vadd.f32 %v30, %v32
    %s34 = scalar_lea.vmem %s0, 9
    %v35 = vld [vmem:[%s34] ss:$20 sm:$0xf]
    %v36 = vadd.f32 %v33, %v35
    %s37 = scalar_lea.vmem %s0, 10
    %v38 = vld [vmem:[%s37] ss:$20 sm:$0xf]
    %v39 = vadd.f32 %v36, %v38
    %s40 = scalar_lea.vmem %s0, 11
    %v41 = vld [vmem:[%s40] ss:$20 sm:$0xf]
    %v42 = vadd.f32 %v39, %v41
    %s43 = scalar_lea.vmem %s0, 12
    %v44 = vld [vmem:[%s43] ss:$20 sm:$0xf]
    %v45 = vadd.f32 %v42, %v44
    %s46 = scalar_lea.vmem %s0, 13
    %v47 = vld [vmem:[%s46] ss:$20 sm:$0xf]
    %v48 = vadd.f32 %v45, %v47
    %s49 = scalar_lea.vmem %s0, 14
    %v50 = vld [vmem:[%s49] ss:$20 sm:$0xf]
    %v51 = vadd.f32 %v48, %v50
    %s52 = scalar_lea.vmem %s0, 15
    %v53 = vld [vmem:[%s52] ss:$20 sm:$0xf]
    %v54 = vadd.f32 %v51, %v53
    %s55 = scalar_lea.vmem %s0, 16
    %v56 = vld [vmem:[%s55] ss:$20 sm:$0xf]
    %v57 = vadd.f32 %v54, %v56
    %s58 = scalar_lea.vmem %s0, 17
    %v59 = vld [vmem:[%s58] ss:$20 sm:$0xf]
    %v60 = vadd.f32 %v57, %v59
    %s61 = scalar_lea.vmem %s0, 18
    %v62 = vld [vmem:[%s61] ss:$20 sm:$0xf]
    %v63 = vadd.f32 %v60, %v62
    %s64 = scalar_lea.vmem %s0, 19
    %v65 = vld [vmem:[%s64] ss:$20 sm:$0xf]
    %v66 = vadd.f32 %v63, %v65
    %v67 = vmul.f32 %v66, 0.05
    %vm68 = vcmask 257024
    %69 = vst.msk [vmem:[#allocation2] sm:$0xf] %vm68, %v67
    // Predicated region
    $region6: #{tpu_custom_call.1} parent=1 // pred_check
      _
    $region7: #{tpu_custom_call.1} parent=1 // pred_check_branch
      %71 = sbr.rel (0) target = $region9
    $region8: #{tpu_custom_call.1} parent=1 // pred_region
      %s73 = ssub.s32 64, 64
      %74 = vsyncadd [#allocation3], %s73
      %s76 = sshll.u32 [#allocation2], 4
      %s77 = int_to_ptr.vmem [resolvable:$true] %s76
      %79 = dma.vmem_to_hbm [thread:$0]  %s77, 64, %s1, [#allocation3]
    $region9: #{tpu_custom_call.1} parent=1 // pred_fallthru
      _
    // Predicated region
    $region10: #{tpu_custom_call.1} parent=1 // pred_check
      _
    $region11: #{tpu_custom_call.1} parent=1 // pred_check_branch
      %81 = sbr.rel (0) target = $region13
    $region12: #{tpu_custom_call.1} parent=1 // pred_region
      %82 = dma.done [#allocation3], 64
    $region13: #{tpu_custom_call.1} parent=1 // pred_fallthru
      _
    %83 = vsyncpa [#allocation3], 1

</llo_original>
